<compile_context>
chip_gen: v7x
topology: tpu7x:2x2x1
jax: 0.10.0
libtpu: 0.0.40
codegen_flags: <defaults>
</compile_context>

<pallas_src>
import functools

import jax
import jax.numpy as jnp
from jax.experimental import pallas as pl
from jax.experimental.pallas import tpu as pltpu

_PACK = 4  # logical rows packed per kernel row (4 * 32 features = 128 lanes)


def actor_fwd_kernel(x_ref, w1_ref, b1_ref, w2_ref, b2_ref, o_ref, *, tanh_dtype):
    # Layer 1: bf16 operands on the MXU, f32 accumulate; bias-add in f32.
    x = x_ref[...].astype(jnp.bfloat16)
    z1 = jnp.dot(x, w1_ref[...], preferred_element_type=jnp.float32) + b1_ref[...]
    h1 = jnp.tanh(z1.astype(tanh_dtype))
    # Layer 2: same recipe; h1 goes to the MXU as bf16 (no-op cast if tanh_dtype=bf16).
    z2 = jnp.dot(h1.astype(jnp.bfloat16), w2_ref[...],
                 preferred_element_type=jnp.float32) + b2_ref[...]
    o_ref[...] = jnp.tanh(z2).astype(o_ref.dtype)  # f32 store (logical width)


def prepare_actor_params(w1, b1, w2, b2):
    """One-time param prep (outside the hot path).

    Produces both the logical-width (in, out) bf16 weights and the lane-packed
    block-diagonal variants (4 logical rows per 128-lane row).  Biases stay f32.
    """
    w1 = jnp.asarray(w1, jnp.float32)
    b1 = jnp.asarray(b1, jnp.float32).reshape(1, -1)
    w2 = jnp.asarray(w2, jnp.float32)
    b2 = jnp.asarray(b2, jnp.float32).reshape(1, -1)
    eye = jnp.eye(_PACK, dtype=jnp.float32)
    return dict(
        state_dim=int(w1.shape[0]),
        out_dim=int(w2.shape[1]),
        # logical-width params (fallback when B % _PACK != 0)
        w1=w1.astype(jnp.bfloat16), b1=b1,
        w2=w2.astype(jnp.bfloat16), b2=b2,
        # lane-packed params: blockdiag(W, W, W, W) and tiled biases
        w1p=jnp.kron(eye, w1).astype(jnp.bfloat16), b1p=jnp.tile(b1, (1, _PACK)),
        w2p=jnp.kron(eye, w2).astype(jnp.bfloat16), b2p=jnp.tile(b2, (1, _PACK)),
    )


def actor_forward(state, params, *, batch_tile=8192, gridless_max_rows=512,
                  vmem_budget_bytes=24 << 20, tanh_dtype=jnp.float32):
    """Pallas equivalent of Actor.forward(state) -> (B, out_dim) float32."""
    assert state.ndim == 2 and state.shape[1] == params["state_dim"]
    B, S = state.shape
    out_dim = params["out_dim"]

    use_pack = (B % _PACK == 0) and (B >= _PACK)
    if use_pack:
        x = state.reshape(B // _PACK, S * _PACK)  # contiguous view, free
        w1, b1, w2, b2 = params["w1p"], params["b1p"], params["w2p"], params["b2p"]
    else:
        x = state
        w1, b1, w2, b2 = params["w1"], params["b1"], params["w2"], params["b2"]

    R, Sp = x.shape
    H_out = w2.shape[1]
    kernel = functools.partial(actor_fwd_kernel, tanh_dtype=tanh_dtype)

    # VMEM footprint guard for the gridless path (v7x: 32 MiB scoped default).
    footprint = (R * Sp * jnp.dtype(x.dtype).itemsize          # input
                 + R * H_out * 4                                # f32 output
                 + (w1.size + w2.size) * 2
                 + (b1.size + b2.size) * 4)

    if B <= gridless_max_rows and footprint < vmem_budget_bytes:
        # Gridless single-shot call: no pipeline prologue/epilogue, no double buffers.
        vmem = pl.BlockSpec(memory_space=pltpu.MemorySpace.VMEM)
        out = pl.pallas_call(
            kernel,
            out_shape=jax.ShapeDtypeStruct((R, H_out), jnp.float32),
            in_specs=[vmem] * 5,
            out_specs=vmem,
        )(x, w1, b1, w2, b2)
    else:
        # Batch-tiled path: tile only the batch axis; weights/biases stay resident.
        tile_rows = max(_PACK, batch_tile) // (_PACK if use_pack else 1)
        tb = min(tile_rows, -(-pl.cdiv(R, 2) // 8) * 8)  # >= 2 grid steps (megacore)
        tb = max(8, tb)
        out = pl.pallas_call(
            kernel,
            out_shape=jax.ShapeDtypeStruct((R, H_out), jnp.float32),
            grid=(pl.cdiv(R, tb),),   # ragged last block -> masked writes, no jnp.pad
            in_specs=[
                pl.BlockSpec((tb, Sp), lambda i: (i, 0)),     # state: tiled over batch
                pl.BlockSpec(w1.shape, lambda i: (0, 0)),     # weights/biases: resident
                pl.BlockSpec(b1.shape, lambda i: (0, 0)),
                pl.BlockSpec(w2.shape, lambda i: (0, 0)),
                pl.BlockSpec(b2.shape, lambda i: (0, 0)),
            ],
            out_specs=pl.BlockSpec((tb, H_out), lambda i: (i, 0)),
            # TODO(synk): if xprof shows one v7x TensorCore idle, switch the batch
            # axis to pltpu.CORE_PARALLEL (or pl.core_map over a TC mesh).
            compiler_params=pltpu.CompilerParams(
                dimension_semantics=("parallel",),
            ),
        )(x, w1, b1, w2, b2)

    if use_pack:
        return out.reshape(B, H_out // _PACK)  # (B, out_dim), contiguous, free
    return out  # already (B, out_dim)


def init_actor_params(key, state_dim, action_dim, hidden_layers, dtype=jnp.float32):
    """Deterministic synthetic parameters matching the implied nn.Linear shapes,
    stored (in, out) so the kernel computes x @ W + b with no transpose."""
    h1, h2 = hidden_layers
    k1, k2, k3, k4, k5, k6 = jax.random.split(key, 6)
    w1 = jax.random.normal(k1, (state_dim, h1), dtype) * 0.1
    b1 = jax.random.normal(k2, (1, h1), dtype) * 0.1
    w2 = jax.random.normal(k3, (h1, h2), dtype) * 0.1
    b2 = jax.random.normal(k4, (1, h2), dtype) * 0.1
    # l3 exists in the module but forward() does not use it (only pi() does).
    w3 = jax.random.normal(k5, (h2, action_dim), dtype) * 0.1
    b3 = jax.random.normal(k6, (1, action_dim), dtype) * 0.1
    return w1, b1, w2, b2, w3, b3


if __name__ == "__main__":
    batch = 8
    state_dim = 16
    action_dim = 4
    hidden_layers = [32, 32]

    key = jax.random.PRNGKey(0)
    k_params, k_small, k_big, k_odd = jax.random.split(key, 4)
    w1, b1, w2, b2, _, _ = init_actor_params(
        k_params, state_dim, action_dim, hidden_layers
    )
    params = prepare_actor_params(w1, b1, w2, b2)

    def ref_fwd(s):
        return jnp.tanh(jnp.tanh(s @ w1 + b1) @ w2 + b2)

    # --- small batch: gridless, lane-packed path ---
    state = jax.random.normal(k_small, (batch, state_dim), jnp.float32)
    out = jax.block_until_ready(actor_forward(state, params))
    assert out.shape == (batch, hidden_layers[1])
    assert jnp.allclose(out, ref_fwd(state), atol=2e-2, rtol=2e-2)  # bf16 MXU inputs

    # --- large batch, non-multiple of tile: batch-tiled, lane-packed, ragged last block ---
    big_state = jax.random.normal(k_big, (4100, state_dim), jnp.float32)
    big_out = jax.block_until_ready(actor_forward(big_state, params, batch_tile=2048))
    assert big_out.shape == (4100, hidden_layers[1])
    assert jnp.allclose(big_out, ref_fwd(big_state), atol=2e-2, rtol=2e-2)

    # --- batch not divisible by 4: unpacked tiled fallback (masked 32-lane stores) ---
    odd_state = jax.random.normal(k_odd, (1026, state_dim), jnp.float32)
    odd_out = jax.block_until_ready(actor_forward(odd_state, params))
    assert odd_out.shape == (1026, hidden_layers[1])
    assert jnp.allclose(odd_out, ref_fwd(odd_state), atol=2e-2, rtol=2e-2)

    # TODO(synk): Actor.pi (l3 + softmax) is not part of forward(); not implemented here.
    print("KERNEL_OK")
</pallas_src>

<mosaic_0001>
module attributes {stable_mosaic.version = 11 : i64} {
  func.func @actor_fwd_kernel(%arg0: memref<2x64xf32, #tpu.memory_space<vmem>>, %arg1: memref<64x128xbf16, #tpu.memory_space<vmem>>, %arg2: memref<1x128xf32, #tpu.memory_space<vmem>>, %arg3: memref<128x128xbf16, #tpu.memory_space<vmem>>, %arg4: memref<1x128xf32, #tpu.memory_space<vmem>>, %arg5: memref<2x128xf32, #tpu.memory_space<vmem>>) attributes {dimension_semantics = [], scalar_prefetch = 0 : i64, scratch_operands = 0 : i64, tpu.core_type = #tpu.core_type<tc>} {
    %c0 = arith.constant 0 : index
    %c0_0 = arith.constant 0 : index
    %0 = vector.load %arg0[%c0, %c0_0] : memref<2x64xf32, #tpu.memory_space<vmem>>, vector<2x64xf32>
    %1 = arith.truncf %0 : vector<2x64xf32> to vector<2x64xbf16>
    %c0_1 = arith.constant 0 : index
    %c0_2 = arith.constant 0 : index
    %2 = vector.load %arg1[%c0_1, %c0_2] : memref<64x128xbf16, #tpu.memory_space<vmem>>, vector<64x128xbf16>
    %cst = arith.constant dense<0.000000e+00> : vector<2x128xf32>
    %3 = tpu.matmul %1, %2, %cst {dimension_numbers = #tpu.dot_dimension_numbers<[1], [0], [0], [1], [0, 0, 1, 1], [], []>} : vector<2x64xbf16>, vector<64x128xbf16>, vector<2x128xf32> -> vector<2x128xf32>
    %c0_3 = arith.constant 0 : index
    %c0_4 = arith.constant 0 : index
    %4 = vector.load %arg2[%c0_3, %c0_4] : memref<1x128xf32, #tpu.memory_space<vmem>>, vector<1x128xf32>
    %5 = vector.broadcast %4 : vector<1x128xf32> to vector<2x128xf32>
    %6 = arith.addf %3, %5 : vector<2x128xf32>
    %7 = math.tanh %6 : vector<2x128xf32>
    %8 = arith.truncf %7 : vector<2x128xf32> to vector<2x128xbf16>
    %c0_5 = arith.constant 0 : index
    %c0_6 = arith.constant 0 : index
    %9 = vector.load %arg3[%c0_5, %c0_6] : memref<128x128xbf16, #tpu.memory_space<vmem>>, vector<128x128xbf16>
    %cst_7 = arith.constant dense<0.000000e+00> : vector<2x128xf32>
    %10 = tpu.matmul %8, %9, %cst_7 {dimension_numbers = #tpu.dot_dimension_numbers<[1], [0], [0], [1], [0, 0, 1, 1], [], []>} : vector<2x128xbf16>, vector<128x128xbf16>, vector<2x128xf32> -> vector<2x128xf32>
    %c0_8 = arith.constant 0 : index
    %c0_9 = arith.constant 0 : index
    %11 = vector.load %arg4[%c0_8, %c0_9] : memref<1x128xf32, #tpu.memory_space<vmem>>, vector<1x128xf32>
    %12 = vector.broadcast %11 : vector<1x128xf32> to vector<2x128xf32>
    %13 = arith.addf %10, %12 : vector<2x128xf32>
    %14 = math.tanh %13 : vector<2x128xf32>
    %c0_10 = arith.constant 0 : index
    %c0_11 = arith.constant 0 : index
    %15 = vector.load %arg5[%c0_10, %c0_11] : memref<2x128xf32, #tpu.memory_space<vmem>>, vector<2x128xf32>
    tpu.vector_store %arg5[%c0_10, %c0_11], %14 {strides = array<i32>} : memref<2x128xf32, #tpu.memory_space<vmem>>, vector<2x128xf32>,
    return
  }
}

</mosaic_0001>

<llo_original>
// kernel: tpu_custom_call.1
$region0: #{tpu_custom_call.1}
  #allocation0 [shape = 'u32[]', space=smem, size = 0x4, offset = 0x4, fixed_abs, tag = 'smem constant byte address 0x4 - core index']
  #allocation1 [shape = 'u32[144,128]{1,0:T(1,128)}', space=vmem, size = 0x12000, scoped, tag = 'internal scratch']
  %s0 = inlined_call_operand.hbm [shape: f32[2,64], index: 0, kind: input, shape index: {}]
  %s1 = inlined_call_operand.hbm [shape: bf16[64,128], index: 1, kind: input, shape index: {}]
  %s2 = inlined_call_operand.vmem [shape: f32[1,128], index: 2, kind: input, shape index: {}]
  %s3 = inlined_call_operand.hbm [shape: bf16[128,128], index: 3, kind: input, shape index: {}]
  %s4 = inlined_call_operand.vmem [shape: f32[1,128], index: 4, kind: input, shape index: {}]
  %s5 = inlined_call_operand.hbm [shape: f32[2,128], index: 5, kind: output, shape index: {}]
  %s6 = sld [smem:[#allocation0]]
  $region42: #{tpu_custom_call.1} parent=0
    _
  %s8 = ssub.s32 1, %s6
  %s9 = scalar_select 0, %s8, %s6
  $region1: #{tpu_custom_call.1} parent=0
    #allocation2 [shape = 'u8[1024]{0}', space=vmem, size = 0x400, scoped, tag = 'input window, operand 0, single buffered']
    #allocation3 [shape = 's32[1]{0}', space=sflag, size = 0x4, scoped, tag = 'scoped memory for tpu_custom_call.1']
    #allocation4 [shape = 's32[1]{0}', space=sflag, size = 0x4, scoped, tag = 'scoped memory for tpu_custom_call.1']
    #allocation5 [shape = 'u8[16384]{0}', space=vmem, size = 0x4000, scoped, tag = 'input window, operand 1, single buffered']
    #allocation6 [shape = 's32[1]{0}', space=sflag, size = 0x4, scoped, tag = 'scoped memory for tpu_custom_call.1']
    #allocation7 [shape = 'u8[32768]{0}', space=vmem, size = 0x8000, scoped, tag = 'input window, operand 3, single buffered']
    #allocation8 [shape = 'u8[1024]{0}', space=vmem, size = 0x400, scoped, tag = 'output window, operand 0, single buffered']
    %10 = vsyncpa [#allocation3], 0
    %11 = vsyncpa [#allocation6], 0
    %12 = vsyncpa [#allocation4], 0
    // Predicated region
    $region2: #{tpu_custom_call.1} parent=1 // pred_check
      _
    $region3: #{tpu_custom_call.1} parent=1 // pred_check_branch
      %14 = sbr.rel (0) target = $region5
    $region4: #{tpu_custom_call.1} parent=1 // pred_region
      %s16 = ssub.s32 32, 32
      %17 = vsyncadd [#allocation3], %s16
      %s19 = sshll.u32 [#allocation2], 4
      %s20 = int_to_ptr.vmem [resolvable:$true] %s19
      %22 = dma.hbm_to_vmem [thread:$0]  %s0, 32, %s20, [#allocation3]
    $region5: #{tpu_custom_call.1} parent=1 // pred_fallthru
      _
    // Predicated region
    $region6: #{tpu_custom_call.1} parent=1 // pred_check
      _
    $region7: #{tpu_custom_call.1} parent=1 // pred_check_branch
      %24 = sbr.rel (0) target = $region9
    $region8: #{tpu_custom_call.1} parent=1 // pred_region
      %s26 = ssub.s32 512, 512
      %27 = vsyncadd [#allocation6], %s26
      %s28 = sshll.u32 [#allocation5], 4
      %s29 = int_to_ptr.vmem [resolvable:$true] %s28
      %34 = dma.hbm_to_vmem [thread:$0]  %s1, 512, %s29, [#allocation6], 64, 64, 4
    $region9: #{tpu_custom_call.1} parent=1 // pred_fallthru
      _
    // Predicated region
    $region10: #{tpu_custom_call.1} parent=1 // pred_check
      _
    $region11: #{tpu_custom_call.1} parent=1 // pred_check_branch
      %36 = sbr.rel (0) target = $region13
    $region12: #{tpu_custom_call.1} parent=1 // pred_region
      _
    $region13: #{tpu_custom_call.1} parent=1 // pred_fallthru
      _
    // Predicated region
    $region14: #{tpu_custom_call.1} parent=1 // pred_check
      _
    $region15: #{tpu_custom_call.1} parent=1 // pred_check_branch
      %38 = sbr.rel (0) target = $region17
    $region16: #{tpu_custom_call.1} parent=1 // pred_region
      %s40 = ssub.s32 1024, 1024
      %41 = vsyncadd [#allocation6], %s40
      %s42 = sshll.u32 [#allocation7], 4
      %s43 = int_to_ptr.vmem [resolvable:$true] %s42
      %48 = dma.hbm_to_vmem [thread:$0]  %s3, 1024, %s43, [#allocation6], 64, 64, 4
    $region17: #{tpu_custom_call.1} parent=1 // pred_fallthru
      _
    // Predicated region
    $region18: #{tpu_custom_call.1} parent=1 // pred_check
      _
    $region19: #{tpu_custom_call.1} parent=1 // pred_check_branch
      %50 = sbr.rel (0) target = $region21
    $region20: #{tpu_custom_call.1} parent=1 // pred_region
      _
    $region21: #{tpu_custom_call.1} parent=1 // pred_fallthru
      _
    // Predicated region
    $region22: #{tpu_custom_call.1} parent=1 // pred_check
      _
    $region23: #{tpu_custom_call.1} parent=1 // pred_check_branch
      %52 = sbr.rel (0) target = $region25
    $region24: #{tpu_custom_call.1} parent=1 // pred_region
      %53 = dma.done [#allocation3], 32
    $region25: #{tpu_custom_call.1} parent=1 // pred_fallthru
      _
    // Predicated region
    $region26: #{tpu_custom_call.1} parent=1 // pred_check
      _
    $region27: #{tpu_custom_call.1} parent=1 // pred_check_branch
      %55 = sbr.rel (0) target = $region29
    $region28: #{tpu_custom_call.1} parent=1 // pred_region
      %56 = dma.done [#allocation6], 512
    $region29: #{tpu_custom_call.1} parent=1 // pred_fallthru
      _
    // Predicated region
    $region30: #{tpu_custom_call.1} parent=1 // pred_check
      _
    $region31: #{tpu_custom_call.1} parent=1 // pred_check_branch
      %58 = sbr.rel (0) target = $region33
    $region32: #{tpu_custom_call.1} parent=1 // pred_region
      %59 = dma.done [#allocation6], 1024
    $region33: #{tpu_custom_call.1} parent=1 // pred_fallthru
      _
    %v61 = vld [vmem:[#allocation2] sm:$0x3]
    %v62 = vpack.c.bf16 %v61, %v61
    %v63 = vld [vmem:[#allocation5] sm:$0xf]
    %v64 = vld [vmem:[#allocation5 + $0x4] sm:$0xf]
    %v65 = vld [vmem:[#allocation5 + $0x8] sm:$0xf]
    %v66 = vld [vmem:[#allocation5 + $0xc] sm:$0xf]
    %v67 = vld [vmem:[#allocation5 + $0x10] sm:$0xf]
    %v68 = vld [vmem:[#allocation5 + $0x14] sm:$0xf]
    %v69 = vld [vmem:[#allocation5 + $0x18] sm:$0xf]
    %v70 = vld [vmem:[#allocation5 + $0x1c] sm:$0xf]
    %v71 = vld [vmem:[%s2] sm:$0x1]
    %v73 = vlaneseq
    %v74 = vshrl.u32 %v73, 7
    %v75 = vsub.s32 0, %v74
    %v76 = vrot.slane %v71, %v75
    %v86 = vunpack.c.l.b16 %v63
    %v87 = vunpack.c.l.b16 %v64
    %v88 = vunpack.c.l.b16 %v65
    %v89 = vunpack.c.l.b16 %v66
    %v90 = vunpack.c.l.b16 %v67
    %v91 = vunpack.c.l.b16 %v68
    %v92 = vunpack.c.l.b16 %v69
    %v93 = vunpack.c.l.b16 %v70
    %v94 = vpack.c.b16 %v87, %v86
    %v95 = vpack.c.b16 %v89, %v88
    %v96 = vpack.c.b16 %v91, %v90
    %v97 = vpack.c.b16 %v93, %v92
    %vm102 = vcmask 523264
    %v104 = vsel %vm102, %v62, 0
    %106 = vmatprep.subr.bf16.mxu0 0
    %107 = vmatpush1.bf16.msra.mxu0 %v94
    %108 = vmatprep.subr.bf16.mxu0 0
    %109 = vmatpush1.bf16.msra.mxu0 %v95
    %110 = vmatprep.subr.bf16.mxu0 0
    %111 = vmatpush1.bf16.msra.mxu0 %v96
    %112 = vmatprep.subr.bf16.mxu0 0
    %113 = vmatpush1.bf16.msra.mxu0 %v97
    %114 = vmatprep.subr.bf16.mxu0 0
    %115 = vmatpush1.bf16.msra.mxu0 0
    %116 = vmatprep.subr.bf16.mxu0 0
    %117 = vmatpush1.bf16.msra.mxu0 0
    %118 = vmatprep.subr.bf16.mxu0 0
    %119 = vmatpush1.bf16.msra.mxu0 0
    %120 = vmatprep.subr.bf16.mxu0 0
    %121 = vmatpush1.bf16.msra.mxu0 0
    %122 = vmatprep.subr.bf16.mxu0 0
    %123 = vmatpush1.bf16.msra.mxu0 0
    %124 = vmatprep.subr.bf16.mxu0 0
    %125 = vmatpush1.bf16.msra.mxu0 0
    %126 = vmatprep.subr.bf16.mxu0 0
    %127 = vmatpush1.bf16.msra.mxu0 0
    %128 = vmatprep.subr.bf16.mxu0 0
    %129 = vmatpush1.bf16.msra.mxu0 0
    %130 = vmatprep.subr.bf16.mxu0 0
    %131 = vmatpush1.bf16.msra.mxu0 0
    %132 = vmatprep.subr.bf16.mxu0 0
    %133 = vmatpush1.bf16.msra.mxu0 0
    %134 = vmatprep.subr.bf16.mxu0 0
    %135 = vmatpush1.bf16.msra.mxu0 0
    %136 = vmatprep.subr.bf16.mxu0 0
    %137 = vmatpush1.bf16.msra.mxu0 0
    %138 = vmatprep.mubr.bf16.mxu0 0
    %139 = vmatmul.mubr.bf16.gmra.mrb[0].mxu0 %v104
    %v140 = vpop.f32.mrb[0].mxu0
    %v141 = vadd.f32 %v76, %v140
    %v142 = vpop.f32.mrb[0].mxu0
    %v143 = vpop.f32.mrb[0].mxu0
    %v144 = vpop.f32.mrb[0].mxu0
    %145 = vdwg.mxu0
    %v146 = vtanh.pop %v141
    %v147 = vpack.c.bf16 %v146, %v146
    %v148 = vld [vmem:[#allocation7] sm:$0xf]
    %v149 = vld [vmem:[#allocation7 + $0x4] sm:$0xf]
    %v150 = vld [vmem:[#allocation7 + $0x8] sm:$0xf]
    %v151 = vld [vmem:[#allocation7 + $0xc] sm:$0xf]
    %v152 = vld [vmem:[#allocation7 + $0x10] sm:$0xf]
    %v153 = vld [vmem:[#allocation7 + $0x14] sm:$0xf]
    %v154 = vld [vmem:[#allocation7 + $0x18] sm:$0xf]
    %v155 = vld [vmem:[#allocation7 + $0x1c] sm:$0xf]
    %v156 = vld [vmem:[#allocation7 + $0x20] sm:$0xf]
    %v157 = vld [vmem:[#allocation7 + $0x24] sm:$0xf]
    %v158 = vld [vmem:[#allocation7 + $0x28] sm:$0xf]
    %v159 = vld [vmem:[#allocation7 + $0x2c] sm:$0xf]
    %v160 = vld [vmem:[#allocation7 + $0x30] sm:$0xf]
    %v161 = vld [vmem:[#allocation7 + $0x34] sm:$0xf]
    %v162 = vld [vmem:[#allocation7 + $0x38] sm:$0xf]
    %v163 = vld [vmem:[#allocation7 + $0x3c] sm:$0xf]
    %v164 = vld [vmem:[%s4] sm:$0x1]
    %v166 = vlaneseq
    %v167 = vshrl.u32 %v166, 7
    %v168 = vsub.s32 0, %v167
    %v169 = vrot.slane %v164, %v168
    %v187 = vunpack.c.l.b16 %v148
    %v188 = vunpack.c.l.b16 %v149
    %v189 = vunpack.c.l.b16 %v150
    %v190 = vunpack.c.l.b16 %v151
    %v191 = vunpack.c.l.b16 %v152
    %v192 = vunpack.c.l.b16 %v153
    %v193 = vunpack.c.l.b16 %v154
    %v194 = vunpack.c.l.b16 %v155
    %v195 = vunpack.c.l.b16 %v156
    %v196 = vunpack.c.l.b16 %v157
    %v197 = vunpack.c.l.b16 %v158
    %v198 = vunpack.c.l.b16 %v159
    %v199 = vunpack.c.l.b16 %v160
    %v200 = vunpack.c.l.b16 %v161
    %v201 = vunpack.c.l.b16 %v162
    %v202 = vunpack.c.l.b16 %v163
    %v203 = vpack.c.b16 %v188, %v187
    %v204 = vpack.c.b16 %v190, %v189
    %v205 = vpack.c.b16 %v192, %v191
    %v206 = vpack.c.b16 %v194, %v193
    %v207 = vpack.c.b16 %v196, %v195
    %v208 = vpack.c.b16 %v198, %v197
    %v209 = vpack.c.b16 %v200, %v199
    %v210 = vpack.c.b16 %v202, %v201
    %219 = vmatprep.subr.bf16.mxu0 0
    %220 = vmatpush1.bf16.msra.mxu0 %v203
    %221 = vmatprep.subr.bf16.mxu0 0
    %222 = vmatpush1.bf16.msra.mxu0 %v204
    %223 = vmatprep.subr.bf16.mxu0 0
    %224 = vmatpush1.bf16.msra.mxu0 %v205
    %225 = vmatprep.subr.bf16.mxu0 0
    %226 = vmatpush1.bf16.msra.mxu0 %v206
    %227 = vmatprep.subr.bf16.mxu0 0
    %228 = vmatpush1.bf16.msra.mxu0 %v207
    %229 = vmatprep.subr.bf16.mxu0 0
    %230 = vmatpush1.bf16.msra.mxu0 %v208
    %231 = vmatprep.subr.bf16.mxu0 0
    %232 = vmatpush1.bf16.msra.mxu0 %v209
    %233 = vmatprep.subr.bf16.mxu0 0
    %234 = vmatpush1.bf16.msra.mxu0 %v210
    %235 = vmatprep.subr.bf16.mxu0 0
    %236 = vmatpush1.bf16.msra.mxu0 0
    %237 = vmatprep.subr.bf16.mxu0 0
    %238 = vmatpush1.bf16.msra.mxu0 0
    %239 = vmatprep.subr.bf16.mxu0 0
    %240 = vmatpush1.bf16.msra.mxu0 0
    %241 = vmatprep.subr.bf16.mxu0 0
    %242 = vmatpush1.bf16.msra.mxu0 0
    %243 = vmatprep.subr.bf16.mxu0 0
    %244 = vmatpush1.bf16.msra.mxu0 0
    %245 = vmatprep.subr.bf16.mxu0 0
    %246 = vmatpush1.bf16.msra.mxu0 0
    %247 = vmatprep.subr.bf16.mxu0 0
    %248 = vmatpush1.bf16.msra.mxu0 0
    %249 = vmatprep.subr.bf16.mxu0 0
    %250 = vmatpush1.bf16.msra.mxu0 0
    %251 = vmatprep.mubr.bf16.mxu0 0
    %252 = vmatmul.mubr.bf16.gmra.mrb[0].mxu0 %v147
    %v253 = vpop.f32.mrb[0].mxu0
    %v254 = vadd.f32 %v169, %v253
    %v255 = vpop.f32.mrb[0].mxu0
    %v256 = vpop.f32.mrb[0].mxu0
    %v257 = vpop.f32.mrb[0].mxu0
    %258 = vdwg.mxu0
    %v259 = vtanh.pop %v254
    %260 = vst [vmem:[#allocation8] sm:$0x3] %v259
    // Predicated region
    $region34: #{tpu_custom_call.1} parent=1 // pred_check
      _
    $region35: #{tpu_custom_call.1} parent=1 // pred_check_branch
      %262 = sbr.rel (0) target = $region37
    $region36: #{tpu_custom_call.1} parent=1 // pred_region
      %s264 = ssub.s32 32, 32
      %265 = vsyncadd [#allocation4], %s264
      %s267 = sshll.u32 [#allocation8], 4
      %s268 = int_to_ptr.vmem [resolvable:$true] %s267
      %270 = dma.vmem_to_hbm [thread:$0]  %s268, 32, %s5, [#allocation4]
    $region37: #{tpu_custom_call.1} parent=1 // pred_fallthru
      _
    // Predicated region
    $region38: #{tpu_custom_call.1} parent=1 // pred_check
      _
    $region39: #{tpu_custom_call.1} parent=1 // pred_check_branch
      %272 = sbr.rel (0) target = $region41
    $region40: #{tpu_custom_call.1} parent=1 // pred_region
      %273 = dma.done [#allocation4], 32
    $region41: #{tpu_custom_call.1} parent=1 // pred_fallthru
      _
    %274 = vsyncpa [#allocation3], 1
    %275 = vsyncpa [#allocation6], 1
    %276 = vsyncpa [#allocation4], 1

</llo_original>
